<compile_context>
chip_gen: v6e
topology: v6e:2x2x1
jax: 0.10.0
libtpu: 0.0.40
codegen_flags: <defaults>
</compile_context>

<pallas_src>
import functools

import jax
import jax.numpy as jnp
from jax.experimental import pallas as pl
from jax.experimental.pallas import tpu as pltpu


def _flash_attn_kernel(xq_ref, xkv_ref, wq_ref, bq_ref, wkv_ref, bkv_ref,
                       o_ref, q_scr, m_scr, l_scr, acc_scr, *, scale, dk):
    ki = pl.program_id(2)
    dt = xkv_ref.dtype                      # MXU operand dtype (bf16 path if input is bf16)
    bb, tq, dim = xq_ref.shape
    _, tk, _ = xkv_ref.shape

    # ---- init: runs once per (batch-block, q-tile), at the first kv step -------------------
    @pl.when(ki == 0)
    def _init():
        xq2 = xq_ref[...].reshape(bb * tq, dim)                       # leading-dim collapse (free)
        q = jnp.dot(xq2, wq_ref[...], preferred_element_type=jnp.float32) + bq_ref[...]
        # Pre-scaled Q cached in the input dtype: cast happens once here instead of every kv step.
        q_scr[...] = (q * scale).reshape(bb, tq, -1).astype(q_scr.dtype)
        m_scr[...] = jnp.full(m_scr.shape, -jnp.inf, jnp.float32)
        l_scr[...] = jnp.zeros(l_scr.shape, jnp.float32)
        acc_scr[...] = jnp.zeros(acc_scr.shape, jnp.float32)

    # ---- fused K/V projection for this kv tile (one MXU push, lane width dk+dv) ------------
    xkv2 = xkv_ref[...].reshape(bb * tk, dim)
    kv = (jnp.dot(xkv2, wkv_ref[...], preferred_element_type=jnp.float32)
          + bkv_ref[...]).reshape(bb, tk, -1)
    k = kv[:, :, :dk].astype(dt)
    v = kv[:, :, dk:].astype(dt)

    # ---- scores: contract the shared dk axis directly (no explicit transpose) --------------
    s = jnp.einsum("btd,bsd->bts", q_scr[...], k,
                   preferred_element_type=jnp.float32)                # (bb, tq, tk), f32

    # ---- online softmax update (statistics kept in f32) ------------------------------------
    m_prev = m_scr[...]
    m_new = jnp.maximum(m_prev, jnp.max(s, axis=-1, keepdims=True))
    alpha = jnp.exp(m_prev - m_new)
    p = jnp.exp(s - m_new)
    l_scr[...] = alpha * l_scr[...] + jnp.sum(p, axis=-1, keepdims=True)
    acc_scr[...] = alpha * acc_scr[...] + jnp.einsum(
        "bts,bsd->btd", p.astype(dt), v, preferred_element_type=jnp.float32)
    m_scr[...] = m_new

    # ---- finalize: normalize and write once, at the last kv step ---------------------------
    @pl.when(ki == pl.num_programs(2) - 1)
    def _done():
        inv_l = pl.reciprocal(l_scr[...], approx=True)   # EUP vrcp, its own VLIW slot
        o_ref[...] = (acc_scr[...] * inv_l).astype(o_ref.dtype)


def _pick_tile(n, cap=128):
    """Largest divisor of n that is <= cap (n itself if n <= cap)."""
    if n <= cap:
        return n
    for t in (128, 64, 32, 16, 8, 4, 2):
        if t <= cap and n % t == 0:
            return t
    return n  # fallback: no tiling along this axis


def self_attention(x, wq, bq, wk, bk, wv, bv, *, scale, tq=None, tk=None):
    """x: (B, N, dim); wq/wk: (dim, dk); wv: (dim, dv); bq/bk: (dk,); bv: (dv,)."""
    B, N, dim = x.shape
    dk = wq.shape[1]
    dv = wv.shape[1]

    # Tile sizes: cap at 128 so the (tq, tk) f32 score tile plus double-buffered x tiles fit
    # comfortably in scoped VMEM on every TPU generation (including v7x's 64 MiB).
    if tq is None:
        tq = _pick_tile(N)
    if tk is None:
        tk = _pick_tile(N)
    assert N % tq == 0 and N % tk == 0, "N must be divisible by the tile sizes"
    nq, nk = N // tq, N // tk

    # Tiny-sequence regime: pack several batches into one block (amortize per-grid-step
    # overhead) while keeping the projection row count modest (bb*N <= 1024 rows).
    bb = 1
    if nq == 1 and nk == 1:
        for cand in range(B, 0, -1):
            if B % cand == 0 and cand * N <= 1024:
                bb = cand
                break
    assert B % bb == 0

    wkv = jnp.concatenate([wk, wv], axis=1)                   # (dim, dk+dv) fused K/V weight
    bkv = jnp.concatenate([bk, bv]).reshape(1, dk + dv)
    bq2 = bq.reshape(1, dk)

    kernel = functools.partial(_flash_attn_kernel, scale=scale, dk=dk)

    return pl.pallas_call(
        kernel,
        out_shape=jax.ShapeDtypeStruct((B, N, dv), x.dtype),
        grid_spec=pltpu.PrefetchScalarGridSpec(
            num_scalar_prefetch=0,
            grid=(B // bb, nq, nk),
            in_specs=[
                pl.BlockSpec((bb, tq, dim), lambda b, qi, ki: (b, qi, 0)),   # x rows -> Q
                pl.BlockSpec((bb, tk, dim), lambda b, qi, ki: (b, ki, 0)),   # x rows -> K/V
                pl.BlockSpec((dim, dk), lambda b, qi, ki: (0, 0)),           # Wq
                pl.BlockSpec((1, dk), lambda b, qi, ki: (0, 0)),             # bq
                pl.BlockSpec((dim, dk + dv), lambda b, qi, ki: (0, 0)),      # Wkv (fused)
                pl.BlockSpec((1, dk + dv), lambda b, qi, ki: (0, 0)),        # bkv (fused)
            ],
            out_specs=pl.BlockSpec((bb, tq, dv), lambda b, qi, ki: (b, qi, 0)),
            scratch_shapes=[
                pltpu.VMEM((bb, tq, dk), x.dtype),       # scaled q (input dtype), reused per kv
                pltpu.VMEM((bb, tq, 1), jnp.float32),    # running max
                pltpu.VMEM((bb, tq, 1), jnp.float32),    # running denominator
                pltpu.VMEM((bb, tq, dv), jnp.float32),   # output accumulator
            ],
        ),
        compiler_params=pltpu.CompilerParams(
            dimension_semantics=("parallel", "parallel", "arbitrary")),
    )(x, x, wq, bq2, wkv, bkv)


if __name__ == "__main__":
    # Small shapes consistent with the module: dim=32, dk=32, dv=32, batch=2, seq=8
    B, N, dim, dk, dv = 2, 8, 32, 32, 32
    scale = dk ** (-0.5)

    key = jax.random.PRNGKey(0)
    kx, kwq, kbq, kwk, kbk, kwv, kbv = jax.random.split(key, 7)

    x = jax.random.normal(kx, (B, N, dim), dtype=jnp.float32)
    # nn.Linear default init ~ U(-1/sqrt(in), 1/sqrt(in)); deterministic synthetic params here.
    bound = 1.0 / (dim ** 0.5)
    wq = jax.random.uniform(kwq, (dim, dk), jnp.float32, -bound, bound)
    bq = jax.random.uniform(kbq, (dk,), jnp.float32, -bound, bound)
    wk = jax.random.uniform(kwk, (dim, dk), jnp.float32, -bound, bound)
    bk = jax.random.uniform(kbk, (dk,), jnp.float32, -bound, bound)
    wv = jax.random.uniform(kwv, (dim, dv), jnp.float32, -bound, bound)
    bv = jax.random.uniform(kbv, (dv,), jnp.float32, -bound, bound)

    out = self_attention(x, wq, bq, wk, bk, wv, bv, scale=scale)
    out = jax.block_until_ready(out)

    # Pure-JAX reference check (same math as the PyTorch forward).
    q = x @ wq + bq
    k = x @ wk + bk
    v = x @ wv + bv
    attn = jax.nn.softmax((q @ jnp.swapaxes(k, -2, -1)) * scale, axis=-1)
    ref = attn @ v
    # Tolerance relaxed slightly vs. exact f32 because the softmax denominator uses the
    # EUP approximate reciprocal; everything else accumulates in f32.
    assert jnp.allclose(out, ref, atol=2e-3, rtol=2e-3), "mismatch vs reference"

    print("KERNEL_OK")
</pallas_src>

<mosaic_0001>
module attributes {stable_mosaic.version = 11 : i64} {
  func.func @_flash_attn_kernel(%arg0: i32, %arg1: i32, %arg2: i32, %arg3: memref<2x8x32xf32, #tpu.memory_space<vmem>>, %arg4: memref<2x8x32xf32, #tpu.memory_space<vmem>>, %arg5: memref<32x32xf32, #tpu.memory_space<vmem>>, %arg6: memref<1x32xf32, #tpu.memory_space<vmem>>, %arg7: memref<32x64xf32, #tpu.memory_space<vmem>>, %arg8: memref<1x64xf32, #tpu.memory_space<vmem>>, %arg9: memref<2x8x32xf32, #tpu.memory_space<vmem>>, %arg10: memref<2x8x32xf32, #tpu.memory_space<vmem>>, %arg11: memref<2x8x1xf32, #tpu.memory_space<vmem>>, %arg12: memref<2x8x1xf32, #tpu.memory_space<vmem>>, %arg13: memref<2x8x32xf32, #tpu.memory_space<vmem>>) attributes {dimension_semantics = [#tpu.dimension_semantics<parallel>, #tpu.dimension_semantics<parallel>, #tpu.dimension_semantics<arbitrary>], iteration_bounds = array<i64: 1, 1, 1>, scalar_prefetch = 0 : i64, scratch_operands = 4 : i64, tpu.core_type = #tpu.core_type<tc>, window_params = [{transform_indices = @transform_0, window_bounds = array<i64: 2, 8, 32>}, {transform_indices = @transform_1, window_bounds = array<i64: 2, 8, 32>}, {pipeline_mode = #tpu.pipeline_mode<synchronous>, transform_indices = @transform_2, window_bounds = array<i64: 32, 32>}, {pipeline_mode = #tpu.pipeline_mode<synchronous>, transform_indices = @transform_3, window_bounds = array<i64: 1, 32>}, {pipeline_mode = #tpu.pipeline_mode<synchronous>, transform_indices = @transform_4, window_bounds = array<i64: 32, 64>}, {pipeline_mode = #tpu.pipeline_mode<synchronous>, transform_indices = @transform_5, window_bounds = array<i64: 1, 64>}, {transform_indices = @transform_6, window_bounds = array<i64: 2, 8, 32>}]} {
    %c0_i32 = arith.constant 0 : i32
    %0 = arith.cmpi eq, %arg2, %c0_i32 : i32
    %1 = arith.extui %0 : i1 to i32
    %c0_i32_0 = arith.constant 0 : i32
    %2 = arith.cmpi ne, %1, %c0_i32_0 : i32
    scf.if %2 {
      %c0_34 = arith.constant 0 : index
      %c0_35 = arith.constant 0 : index
      %c0_36 = arith.constant 0 : index
      %40 = vector.load %arg3[%c0_34, %c0_35, %c0_36] : memref<2x8x32xf32, #tpu.memory_space<vmem>>, vector<2x8x32xf32>
      %41 = vector.shape_cast %40 : vector<2x8x32xf32> to vector<16x32xf32>
      %c0_37 = arith.constant 0 : index
      %c0_38 = arith.constant 0 : index
      %42 = vector.load %arg5[%c0_37, %c0_38] : memref<32x32xf32, #tpu.memory_space<vmem>>, vector<32x32xf32>
      %cst_39 = arith.constant dense<0.000000e+00> : vector<16x32xf32>
      %43 = tpu.matmul %41, %42, %cst_39 {dimension_numbers = #tpu.dot_dimension_numbers<[1], [0], [0], [1], [0, 0, 1, 1], [], []>} : vector<16x32xf32>, vector<32x32xf32>, vector<16x32xf32> -> vector<16x32xf32>
      %c0_40 = arith.constant 0 : index
      %c0_41 = arith.constant 0 : index
      %44 = vector.load %arg6[%c0_40, %c0_41] : memref<1x32xf32, #tpu.memory_space<vmem>>, vector<1x32xf32>
      %45 = vector.broadcast %44 : vector<1x32xf32> to vector<16x32xf32>
      %46 = arith.addf %43, %45 : vector<16x32xf32>
      %cst_42 = arith.constant 0.176776692 : f32
      %47 = vector.broadcast %cst_42 : f32 to vector<16x32xf32>
      %48 = arith.mulf %46, %47 : vector<16x32xf32>
      %49 = vector.shape_cast %48 : vector<16x32xf32> to vector<2x8x32xf32>
      %c0_43 = arith.constant 0 : index
      %c0_44 = arith.constant 0 : index
      %c0_45 = arith.constant 0 : index
      %50 = vector.load %arg10[%c0_43, %c0_44, %c0_45] : memref<2x8x32xf32, #tpu.memory_space<vmem>>, vector<2x8x32xf32>
      tpu.vector_store %arg10[%c0_43, %c0_44, %c0_45], %49 {strides = array<i32>} : memref<2x8x32xf32, #tpu.memory_space<vmem>>, vector<2x8x32xf32>,
      %cst_46 = arith.constant 0xFF800000 : f32
      %51 = vector.broadcast %cst_46 : f32 to vector<2x8x1xf32>
      %c0_47 = arith.constant 0 : index
      %c0_48 = arith.constant 0 : index
      %c0_49 = arith.constant 0 : index
      %52 = vector.load %arg11[%c0_47, %c0_48, %c0_49] : memref<2x8x1xf32, #tpu.memory_space<vmem>>, vector<2x8x1xf32>
      tpu.vector_store %arg11[%c0_47, %c0_48, %c0_49], %51 {strides = array<i32>} : memref<2x8x1xf32, #tpu.memory_space<vmem>>, vector<2x8x1xf32>,
      %cst_50 = arith.constant 0.000000e+00 : f32
      %53 = vector.broadcast %cst_50 : f32 to vector<2x8x1xf32>
      %c0_51 = arith.constant 0 : index
      %c0_52 = arith.constant 0 : index
      %c0_53 = arith.constant 0 : index
      %54 = vector.load %arg12[%c0_51, %c0_52, %c0_53] : memref<2x8x1xf32, #tpu.memory_space<vmem>>, vector<2x8x1xf32>
      tpu.vector_store %arg12[%c0_51, %c0_52, %c0_53], %53 {strides = array<i32>} : memref<2x8x1xf32, #tpu.memory_space<vmem>>, vector<2x8x1xf32>,
      %cst_54 = arith.constant 0.000000e+00 : f32
      %55 = vector.broadcast %cst_54 : f32 to vector<2x8x32xf32>
      %c0_55 = arith.constant 0 : index
      %c0_56 = arith.constant 0 : index
      %c0_57 = arith.constant 0 : index
      %56 = vector.load %arg13[%c0_55, %c0_56, %c0_57] : memref<2x8x32xf32, #tpu.memory_space<vmem>>, vector<2x8x32xf32>
      tpu.vector_store %arg13[%c0_55, %c0_56, %c0_57], %55 {strides = array<i32>} : memref<2x8x32xf32, #tpu.memory_space<vmem>>, vector<2x8x32xf32>,
    } else {
    }
    %c0 = arith.constant 0 : index
    %c0_1 = arith.constant 0 : index
    %c0_2 = arith.constant 0 : index
    %3 = vector.load %arg4[%c0, %c0_1, %c0_2] : memref<2x8x32xf32, #tpu.memory_space<vmem>>, vector<2x8x32xf32>
    %4 = vector.shape_cast %3 : vector<2x8x32xf32> to vector<16x32xf32>
    %c0_3 = arith.constant 0 : index
    %c0_4 = arith.constant 0 : index
    %5 = vector.load %arg7[%c0_3, %c0_4] : memref<32x64xf32, #tpu.memory_space<vmem>>, vector<32x64xf32>
    %cst = arith.constant dense<0.000000e+00> : vector<16x64xf32>
    %6 = tpu.matmul %4, %5, %cst {dimension_numbers = #tpu.dot_dimension_numbers<[1], [0], [0], [1], [0, 0, 1, 1], [], []>} : vector<16x32xf32>, vector<32x64xf32>, vector<16x64xf32> -> vector<16x64xf32>
    %c0_5 = arith.constant 0 : index
    %c0_6 = arith.constant 0 : index
    %7 = vector.load %arg8[%c0_5, %c0_6] : memref<1x64xf32, #tpu.memory_space<vmem>>, vector<1x64xf32>
    %8 = vector.broadcast %7 : vector<1x64xf32> to vector<16x64xf32>
    %9 = arith.addf %6, %8 : vector<16x64xf32>
    %10 = vector.shape_cast %9 : vector<16x64xf32> to vector<2x8x64xf32>
    %11 = vector.extract_strided_slice %10 {offsets = [0, 0, 0], sizes = [2, 8, 32], strides = [1, 1, 1]} : vector<2x8x64xf32> to vector<2x8x32xf32>
    %12 = vector.extract_strided_slice %10 {offsets = [0, 0, 32], sizes = [2, 8, 32], strides = [1, 1, 1]} : vector<2x8x64xf32> to vector<2x8x32xf32>
    %c0_7 = arith.constant 0 : index
    %c0_8 = arith.constant 0 : index
    %c0_9 = arith.constant 0 : index
    %13 = vector.load %arg10[%c0_7, %c0_8, %c0_9] : memref<2x8x32xf32, #tpu.memory_space<vmem>>, vector<2x8x32xf32>
    "tpu.trace_start"() <{level = 10 : i32, message = "btd,bsd->bts"}> : () -> ()
    %cst_10 = arith.constant dense<0.000000e+00> : vector<2x8x8xf32>
    %14 = tpu.matmul %13, %11, %cst_10 {dimension_numbers = #tpu.dot_dimension_numbers<[2], [2], [1], [1], [0, 0, 0, 1, 1, 1], [0], [0]>} : vector<2x8x32xf32>, vector<2x8x32xf32>, vector<2x8x8xf32> -> vector<2x8x8xf32>
    "tpu.trace_stop"() : () -> ()
    %c0_11 = arith.constant 0 : index
    %c0_12 = arith.constant 0 : index
    %c0_13 = arith.constant 0 : index
    %15 = vector.load %arg11[%c0_11, %c0_12, %c0_13] : memref<2x8x1xf32, #tpu.memory_space<vmem>>, vector<2x8x1xf32>
    %cst_14 = arith.constant dense<0xFF800000> : vector<2x8xf32>
    %16 = vector.multi_reduction <maximumf>, %14, %cst_14 [2] : vector<2x8x8xf32> to vector<2x8xf32>
    %17 = vector.shape_cast %16 : vector<2x8xf32> to vector<2x8x1xf32>
    %18 = arith.maximumf %15, %17 : vector<2x8x1xf32>
    %19 = arith.subf %15, %18 : vector<2x8x1xf32>
    %20 = math.exp %19 : vector<2x8x1xf32>
    %21 = vector.broadcast %18 : vector<2x8x1xf32> to vector<2x8x8xf32>
    %22 = arith.subf %14, %21 : vector<2x8x8xf32>
    %23 = math.exp %22 : vector<2x8x8xf32>
    %c0_15 = arith.constant 0 : index
    %c0_16 = arith.constant 0 : index
    %c0_17 = arith.constant 0 : index
    %24 = vector.load %arg12[%c0_15, %c0_16, %c0_17] : memref<2x8x1xf32, #tpu.memory_space<vmem>>, vector<2x8x1xf32>
    %25 = arith.mulf %20, %24 : vector<2x8x1xf32>
    %cst_18 = arith.constant dense<0.000000e+00> : vector<2x8xf32>
    %26 = vector.multi_reduction <add>, %23, %cst_18 [2] : vector<2x8x8xf32> to vector<2x8xf32>
    %27 = vector.shape_cast %26 : vector<2x8xf32> to vector<2x8x1xf32>
    %28 = arith.addf %25, %27 : vector<2x8x1xf32>
    %c0_19 = arith.constant 0 : index
    %c0_20 = arith.constant 0 : index
    %c0_21 = arith.constant 0 : index
    %29 = vector.load %arg12[%c0_19, %c0_20, %c0_21] : memref<2x8x1xf32, #tpu.memory_space<vmem>>, vector<2x8x1xf32>
    tpu.vector_store %arg12[%c0_19, %c0_20, %c0_21], %28 {strides = array<i32>} : memref<2x8x1xf32, #tpu.memory_space<vmem>>, vector<2x8x1xf32>,
    %c0_22 = arith.constant 0 : index
    %c0_23 = arith.constant 0 : index
    %c0_24 = arith.constant 0 : index
    %30 = vector.load %arg13[%c0_22, %c0_23, %c0_24] : memref<2x8x32xf32, #tpu.memory_space<vmem>>, vector<2x8x32xf32>
    %31 = vector.broadcast %20 : vector<2x8x1xf32> to vector<2x8x32xf32>
    %32 = arith.mulf %31, %30 : vector<2x8x32xf32>
    "tpu.trace_start"() <{level = 10 : i32, message = "bts,bsd->btd"}> : () -> ()
    %cst_25 = arith.constant dense<0.000000e+00> : vector<2x8x32xf32>
    %33 = tpu.matmul %23, %12, %cst_25 {dimension_numbers = #tpu.dot_dimension_numbers<[2], [1], [1], [2], [0, 0, 0, 1, 1, 2], [0], [0]>} : vector<2x8x8xf32>, vector<2x8x32xf32>, vector<2x8x32xf32> -> vector<2x8x32xf32>
    "tpu.trace_stop"() : () -> ()
    %34 = arith.addf %32, %33 : vector<2x8x32xf32>
    %c0_26 = arith.constant 0 : index
    %c0_27 = arith.constant 0 : index
    %c0_28 = arith.constant 0 : index
    %35 = vector.load %arg13[%c0_26, %c0_27, %c0_28] : memref<2x8x32xf32, #tpu.memory_space<vmem>>, vector<2x8x32xf32>
    tpu.vector_store %arg13[%c0_26, %c0_27, %c0_28], %34 {strides = array<i32>} : memref<2x8x32xf32, #tpu.memory_space<vmem>>, vector<2x8x32xf32>,
    %c0_29 = arith.constant 0 : index
    %c0_30 = arith.constant 0 : index
    %c0_31 = arith.constant 0 : index
    %36 = vector.load %arg11[%c0_29, %c0_30, %c0_31] : memref<2x8x1xf32, #tpu.memory_space<vmem>>, vector<2x8x1xf32>
    tpu.vector_store %arg11[%c0_29, %c0_30, %c0_31], %18 {strides = array<i32>} : memref<2x8x1xf32, #tpu.memory_space<vmem>>, vector<2x8x1xf32>,
    %c0_i32_32 = arith.constant 0 : i32
    %37 = arith.cmpi eq, %arg2, %c0_i32_32 : i32
    %38 = arith.extui %37 : i1 to i32
    %c0_i32_33 = arith.constant 0 : i32
    %39 = arith.cmpi ne, %38, %c0_i32_33 : i32
    scf.if %39 {
      %c0_34 = arith.constant 0 : index
      %c0_35 = arith.constant 0 : index
      %c0_36 = arith.constant 0 : index
      %40 = vector.load %arg12[%c0_34, %c0_35, %c0_36] : memref<2x8x1xf32, #tpu.memory_space<vmem>>, vector<2x8x1xf32>
      %41 = tpu.reciprocal %40 {approx = true} : vector<2x8x1xf32> -> vector<2x8x1xf32>
      %c0_37 = arith.constant 0 : index
      %c0_38 = arith.constant 0 : index
      %c0_39 = arith.constant 0 : index
      %42 = vector.load %arg13[%c0_37, %c0_38, %c0_39] : memref<2x8x32xf32, #tpu.memory_space<vmem>>, vector<2x8x32xf32>
      %43 = vector.broadcast %41 : vector<2x8x1xf32> to vector<2x8x32xf32>
      %44 = arith.mulf %42, %43 : vector<2x8x32xf32>
      %c0_40 = arith.constant 0 : index
      %c0_41 = arith.constant 0 : index
      %c0_42 = arith.constant 0 : index
      %45 = vector.load %arg9[%c0_40, %c0_41, %c0_42] : memref<2x8x32xf32, #tpu.memory_space<vmem>>, vector<2x8x32xf32>
      tpu.vector_store %arg9[%c0_40, %c0_41, %c0_42], %44 {strides = array<i32>} : memref<2x8x32xf32, #tpu.memory_space<vmem>>, vector<2x8x32xf32>,
    } else {
    }
    return
  }
  func.func @transform_0(%arg0: i32, %arg1: i32, %arg2: i32) -> (i32, i32, i32) {
    %c0_i32 = arith.constant 0 : i32
    %c0_i32_0 = arith.constant 0 : i32
    return %arg0, %arg1, %c0_i32 : i32, i32, i32
  }
  func.func @transform_1(%arg0: i32, %arg1: i32, %arg2: i32) -> (i32, i32, i32) {
    %c0_i32 = arith.constant 0 : i32
    %c0_i32_0 = arith.constant 0 : i32
    return %arg0, %arg2, %c0_i32 : i32, i32, i32
  }
  func.func @transform_2(%arg0: i32, %arg1: i32, %arg2: i32) -> (i32, i32) {
    %c0_i32 = arith.constant 0 : i32
    %c0_i32_0 = arith.constant 0 : i32
    %c0_i32_1 = arith.constant 0 : i32
    return %c0_i32, %c0_i32_0 : i32, i32
  }
  func.func @transform_3(%arg0: i32, %arg1: i32, %arg2: i32) -> (i32, i32) {
    %c0_i32 = arith.constant 0 : i32
    %c0_i32_0 = arith.constant 0 : i32
    %c0_i32_1 = arith.constant 0 : i32
    return %c0_i32, %c0_i32_0 : i32, i32
  }
  func.func @transform_4(%arg0: i32, %arg1: i32, %arg2: i32) -> (i32, i32) {
    %c0_i32 = arith.constant 0 : i32
    %c0_i32_0 = arith.constant 0 : i32
    %c0_i32_1 = arith.constant 0 : i32
    return %c0_i32, %c0_i32_0 : i32, i32
  }
  func.func @transform_5(%arg0: i32, %arg1: i32, %arg2: i32) -> (i32, i32) {
    %c0_i32 = arith.constant 0 : i32
    %c0_i32_0 = arith.constant 0 : i32
    %c0_i32_1 = arith.constant 0 : i32
    return %c0_i32, %c0_i32_0 : i32, i32
  }
  func.func @transform_6(%arg0: i32, %arg1: i32, %arg2: i32) -> (i32, i32, i32) {
    %c0_i32 = arith.constant 0 : i32
    %c0_i32_0 = arith.constant 0 : i32
    return %arg0, %arg1, %c0_i32 : i32, i32, i32
  }
}

</mosaic_0001>

<llo_original>
// kernel: tpu_custom_call.1
$region0: #{tpu_custom_call.1}
  #allocation0 [shape = 'u32[]', space=smem, size = 0x4, offset = 0x4, fixed_abs, tag = 'smem constant byte address 0x4 - core index']
  #allocation1 [shape = 'u32[144,128]{1,0:T(1,128)}', space=vmem, size = 0x12000, scoped, tag = 'internal scratch']
  #allocation2 [shape = 'f32[2,8,32]{2,1,0:T(8,128)}', space=vmem, size = 0x2000, scoped, tag = 'scratch operand']
  #allocation3 [shape = 'f32[2,8,1]{2,1,0:T(8,128)}', space=vmem, size = 0x2000, scoped, tag = 'scratch operand']
  #allocation4 [shape = 'f32[2,8,1]{2,1,0:T(8,128)}', space=vmem, size = 0x2000, scoped, tag = 'scratch operand']
  #allocation5 [shape = 'f32[2,8,32]{2,1,0:T(8,128)}', space=vmem, size = 0x2000, scoped, tag = 'scratch operand']
  %s0 = inlined_call_operand.hbm [shape: f32[2,8,32], index: 0, kind: input, shape index: {}]
  %s1 = inlined_call_operand.hbm [shape: f32[2,8,32], index: 1, kind: input, shape index: {}]
  %s2 = inlined_call_operand.hbm [shape: f32[32,32], index: 2, kind: input, shape index: {}]
  %s3 = inlined_call_operand.vmem [shape: f32[1,32], index: 3, kind: input, shape index: {}]
  %s4 = inlined_call_operand.hbm [shape: f32[32,64], index: 4, kind: input, shape index: {}]
  %s5 = inlined_call_operand.vmem [shape: f32[1,64], index: 5, kind: input, shape index: {}]
  %s6 = inlined_call_operand.hbm [shape: f32[2,8,32], index: 6, kind: output, shape index: {}]
  %s7 = sld [smem:[#allocation0]]
  $region58: #{tpu_custom_call.1} parent=0
    _
  %s9 = ssub.s32 1, %s7
  %s10 = scalar_select 0, %s9, %s7
  $region1: #{tpu_custom_call.1} parent=0
    #allocation6 [shape = 'u8[8192]{0}', space=vmem, size = 0x2000, scoped, tag = 'input window, operand 0, single buffered']
    #allocation7 [shape = 's32[1]{0}', space=sflag, size = 0x4, scoped, tag = 'scoped memory for tpu_custom_call.1']
    #allocation8 [shape = 's32[1]{0}', space=sflag, size = 0x4, scoped, tag = 'scoped memory for tpu_custom_call.1']
    #allocation9 [shape = 'u8[8192]{0}', space=vmem, size = 0x2000, scoped, tag = 'input window, operand 1, single buffered']
    #allocation10 [shape = 's32[1]{0}', space=sflag, size = 0x4, scoped, tag = 'scoped memory for tpu_custom_call.1']
    #allocation11 [shape = 'u8[16384]{0}', space=vmem, size = 0x4000, scoped, tag = 'input window, operand 2, single buffered']
    #allocation12 [shape = 'u8[16384]{0}', space=vmem, size = 0x4000, scoped, tag = 'input window, operand 4, single buffered']
    #allocation13 [shape = 's32[1]{0}', space=sflag, size = 0x4, scoped, tag = 'scoped memory for tpu_custom_call.1']
    #allocation14 [shape = 'u8[8192]{0}', space=vmem, size = 0x2000, scoped, tag = 'output window, operand 0, single buffered']
    %11 = vsyncpa [#allocation7], 0
    %12 = vsyncpa [#allocation10], 0
    %13 = vsyncpa [#allocation13], 0
    %14 = vsyncpa [#allocation8], 0
    // Predicated region
    $region2: #{tpu_custom_call.1} parent=1 // pred_check
      _
    $region3: #{tpu_custom_call.1} parent=1 // pred_check_branch
      %16 = sbr.rel (0) target = $region5
    $region4: #{tpu_custom_call.1} parent=1 // pred_region
      %s18 = ssub.s32 256, 256
      %19 = vsyncadd [#allocation7], %s18
      %s20 = sshll.u32 [#allocation6], 4
      %s21 = int_to_ptr.vmem [resolvable:$true] %s20
      %26 = dma.hbm_to_vmem [thread:$0]  %s0, 256, %s21, [#allocation7], 128, 128, 8
    $region5: #{tpu_custom_call.1} parent=1 // pred_fallthru
      _
    // Predicated region
    $region6: #{tpu_custom_call.1} parent=1 // pred_check
      _
    $region7: #{tpu_custom_call.1} parent=1 // pred_check_branch
      %28 = sbr.rel (0) target = $region9
    $region8: #{tpu_custom_call.1} parent=1 // pred_region
      %s30 = ssub.s32 256, 256
      %31 = vsyncadd [#allocation10], %s30
      %s32 = sshll.u32 [#allocation9], 4
      %s33 = int_to_ptr.vmem [resolvable:$true] %s32
      %38 = dma.hbm_to_vmem [thread:$0]  %s1, 256, %s33, [#allocation10], 128, 128, 8
    $region9: #{tpu_custom_call.1} parent=1 // pred_fallthru
      _
    // Predicated region
    $region10: #{tpu_custom_call.1} parent=1 // pred_check
      _
    $region11: #{tpu_custom_call.1} parent=1 // pred_check_branch
      %40 = sbr.rel (0) target = $region13
    $region12: #{tpu_custom_call.1} parent=1 // pred_region
      %s42 = ssub.s32 512, 512
      %43 = vsyncadd [#allocation10], %s42
      %s44 = sshll.u32 [#allocation11], 4
      %s45 = int_to_ptr.vmem [resolvable:$true] %s44
      %50 = dma.hbm_to_vmem [thread:$0]  %s2, 512, %s45, [#allocation10], 128, 128, 8
    $region13: #{tpu_custom_call.1} parent=1 // pred_fallthru
      _
    // Predicated region
    $region14: #{tpu_custom_call.1} parent=1 // pred_check
      _
    $region15: #{tpu_custom_call.1} parent=1 // pred_check_branch
      %52 = sbr.rel (0) target = $region17
    $region16: #{tpu_custom_call.1} parent=1 // pred_region
      _
    $region17: #{tpu_custom_call.1} parent=1 // pred_fallthru
      _
    // Predicated region
    $region18: #{tpu_custom_call.1} parent=1 // pred_check
      _
    $region19: #{tpu_custom_call.1} parent=1 // pred_check_branch
      %54 = sbr.rel (0) target = $region21
    $region20: #{tpu_custom_call.1} parent=1 // pred_region
      %s56 = ssub.s32 512, 512
      %57 = vsyncadd [#allocation13], %s56
      %s58 = sshll.u32 [#allocation12], 4
      %s59 = int_to_ptr.vmem [resolvable:$true] %s58
      %64 = dma.hbm_to_vmem [thread:$0]  %s4, 512, %s59, [#allocation13], 128, 128, 8
    $region21: #{tpu_custom_call.1} parent=1 // pred_fallthru
      _
    // Predicated region
    $region22: #{tpu_custom_call.1} parent=1 // pred_check
      _
    $region23: #{tpu_custom_call.1} parent=1 // pred_check_branch
      %66 = sbr.rel (0) target = $region25
    $region24: #{tpu_custom_call.1} parent=1 // pred_region
      _
    $region25: #{tpu_custom_call.1} parent=1 // pred_fallthru
      _
    // Predicated region
    $region26: #{tpu_custom_call.1} parent=1 // pred_check
      _
    $region27: #{tpu_custom_call.1} parent=1 // pred_check_branch
      %68 = sbr.rel (0) target = $region29
    $region28: #{tpu_custom_call.1} parent=1 // pred_region
      %69 = dma.done [#allocation7], 256
    $region29: #{tpu_custom_call.1} parent=1 // pred_fallthru
      _
    // Predicated region
    $region30: #{tpu_custom_call.1} parent=1 // pred_check
      _
    $region31: #{tpu_custom_call.1} parent=1 // pred_check_branch
      %71 = sbr.rel (0) target = $region33
    $region32: #{tpu_custom_call.1} parent=1 // pred_region
      %72 = dma.done [#allocation10], 256
    $region33: #{tpu_custom_call.1} parent=1 // pred_fallthru
      _
    // Predicated region
    $region34: #{tpu_custom_call.1} parent=1 // pred_check
      _
    $region35: #{tpu_custom_call.1} parent=1 // pred_check_branch
      %74 = sbr.rel (0) target = $region37
    $region36: #{tpu_custom_call.1} parent=1 // pred_region
      %75 = dma.done [#allocation10], 512
    $region37: #{tpu_custom_call.1} parent=1 // pred_fallthru
      _
    // Predicated region
    $region38: #{tpu_custom_call.1} parent=1 // pred_check
      _
    $region39: #{tpu_custom_call.1} parent=1 // pred_check_branch
      %77 = sbr.rel (0) target = $region41
    $region40: #{tpu_custom_call.1} parent=1 // pred_region
      %78 = dma.done [#allocation13], 512
    $region41: #{tpu_custom_call.1} parent=1 // pred_fallthru
      _
    %p79 = scmp.eq.s32.totalorder 0, 0
    // Predicated region
    $region42: #{tpu_custom_call.1} parent=1 // pred_check
      %p80 = pneg %p79
    $region43: #{tpu_custom_call.1} parent=1 // pred_check_branch
      %82 = sbr.rel (%p80) target = $region45
    $region44: #{tpu_custom_call.1} parent=1 // pred_region
      %v83 = vld [vmem:[#allocation6] sm:$0xff]
      %v84 = vld [vmem:[#allocation6 + $0x8] sm:$0xff]
      %v85 = vld [vmem:[#allocation11] sm:$0xff]
      %v86 = vld [vmem:[#allocation11 + $0x8] sm:$0xff]
      %v87 = vld [vmem:[#allocation11 + $0x10] sm:$0xff]
      %v88 = vld [vmem:[#allocation11 + $0x18] sm:$0xff]
      %v89 = vld [vmem:[%s3] sm:$0x1]
      %v91 = vlaneseq
      %v92 = vshrl.u32 %v91, 7
      %v93 = vsub.s32 0, %v92
      %v94 = vrot.slane %v89, %v93
      %vm96 = vcmask 261120
      %v98 = vsel %vm96, %v83, 0
      %v101 = vsel %vm96, %v84, 0
      %103 = vmatprep.subr.mxu0 0.0
      %104 = vmatpush1.msra.mxu0 0.0
      %105 = vmatprep.subr.mxu0 0.0
      %106 = vmatpush1.msra.mxu0 0.0
      %107 = vmatprep.subr.mxu0 0.0
      %108 = vmatpush1.msra.mxu0 0.0
      %109 = vmatprep.subr.mxu0 0.0
      %110 = vmatpush1.msra.mxu0 0.0
      %111 = vmatprep.subr.mxu0 0.0
      %112 = vmatpush1.msra.mxu0 0.0
      %113 = vmatprep.subr.mxu0 0.0
      %114 = vmatpush1.msra.mxu0 0.0
      %115 = vmatprep.subr.mxu0 0.0
      %116 = vmatpush1.msra.mxu0 0.0
      %117 = vmatprep.subr.mxu0 0.0
      %118 = vmatpush1.msra.mxu0 0.0
      %119 = vmatprep.subr.mxu0 0.0
      %120 = vmatpush1.msra.mxu0 0.0
      %121 = vmatprep.subr.mxu0 0.0
      %122 = vmatpush1.msra.mxu0 0.0
      %123 = vmatprep.subr.mxu0 0.0
      %124 = vmatpush1.msra.mxu0 0.0
      %125 = vmatprep.subr.mxu0 0.0
      %126 = vmatpush1.msra.mxu0 0.0
      %127 = vmatprep.subr.mxu0 0.0
      %128 = vmatpush1.msra.mxu0 %v88
      %129 = vmatprep.subr.mxu0 0.0
      %130 = vmatpush1.msra.mxu0 %v87
      %131 = vmatprep.subr.mxu0 0.0
      %132 = vmatpush1.msra.mxu0 %v86
      %133 = vmatprep.subr.mxu0 0.0
      %134 = vmatpush1.msra.mxu0 %v85
      %135 = vmatprep.subr.mxu0 0.0
      %136 = vmatpush2.msra.mxu0 0.0
      %137 = vmatprep.subr.mxu0 0.0
      %138 = vmatpush2.msra.mxu0 0.0
      %139 = vmatprep.subr.mxu0 0.0
      %140 = vmatpush2.msra.mxu0 0.0
      %141 = vmatprep.subr.mxu0 0.0
      %142 = vmatpush2.msra.mxu0 0.0
      %143 = vmatprep.subr.mxu0 0.0
      %144 = vmatpush2.msra.mxu0 0.0
      %145 = vmatprep.subr.mxu0 0.0
      %146 = vmatpush2.msra.mxu0 0.0
      %147 = vmatprep.subr.mxu0 0.0
      %148 = vmatpush2.msra.mxu0 0.0
      %149 = vmatprep.subr.mxu0 0.0
      %150 = vmatpush2.msra.mxu0 0.0
      %151 = vmatprep.subr.mxu0 0.0
      %152 = vmatpush2.msra.mxu0 0.0
      %153 = vmatprep.subr.mxu0 0.0
      %154 = vmatpush2.msra.mxu0 0.0
      %155 = vmatprep.subr.mxu0 0.0
      %156 = vmatpush2.msra.mxu0 0.0
      %157 = vmatprep.subr.mxu0 0.0
      %158 = vmatpush2.msra.mxu0 0.0
      %159 = vmatprep.subr.mxu0 0.0
      %160 = vmatpush2.msra.mxu0 0.0
      %161 = vmatprep.subr.mxu0 0.0
      %162 = vmatpush2.msra.mxu0 0.0
      %163 = vmatprep.subr.mxu0 0.0
      %164 = vmatpush2.msra.mxu0 0.0
      %165 = vmatprep.subr.mxu0 0.0
      %166 = vmatpush2.msra.mxu0 0.0
      %167 = vmatprep.mubr.f32.mxu0 0.0
      %168 = vmatmul.mubr.f32.gmra.mxu0 %v98
      %v169 = vpop.f32.mrf.mxu0
      %v170 = vadd.f32 %v94, %v169
      %v171 = vpop.f32.mrf.mxu0
      %172 = vmatprep.mubr.f32.mxu0 0.0
      %173 = vmatmul.mubr.f32.gmra.mxu0 %v101
      %v174 = vpop.f32.mrf.mxu0
      %v175 = vadd.f32 %v94, %v174
      %v176 = vpop.f32.mrf.mxu0
      %177 = vdwg.mxu0
      %v178 = vmul.f32 %v170, 0.17677669
      %v179 = vmul.f32 %v175, 0.17677669
      %180 = vst.msk [vmem:[#allocation2] sm:$0xff] %vm96, %v178
      %181 = vst.msk [vmem:[#allocation2 + $0x8] sm:$0xff] %vm96, %v179
      %vm182 = vcmask 7168
      %183 = vst.msk [vmem:[#allocation3] sm:$0xff] %vm182, -inf
      %184 = vst.msk [vmem:[#allocation3 + $0x8] sm:$0xff] %vm182, -inf
      %185 = vst.msk [vmem:[#allocation4] sm:$0xff] %vm182, 0.0
      %186 = vst.msk [vmem:[#allocation4 + $0x8] sm:$0xff] %vm182, 0.0
      %187 = vst.msk [vmem:[#allocation5] sm:$0xff] %vm96, 0.0
      %188 = vst.msk [vmem:[#allocation5 + $0x8] sm:$0xff] %vm96, 0.0
    $region45: #{tpu_custom_call.1} parent=1 // pred_fallthru
      _
    %v189 = vld [vmem:[#allocation9] sm:$0xff]
    %v190 = vld [vmem:[#allocation9 + $0x8] sm:$0xff]
    %v191 = vld [vmem:[#allocation12] sm:$0xff]
    %v192 = vld [vmem:[#allocation12 + $0x8] sm:$0xff]
    %v193 = vld [vmem:[#allocation12 + $0x10] sm:$0xff]
    %v194 = vld [vmem:[#allocation12 + $0x18] sm:$0xff]
    %v195 = vld [vmem:[%s5] sm:$0x1]
    %v197 = vlaneseq
    %v198 = vshrl.u32 %v197, 7
    %v199 = vsub.s32 0, %v198
    %v200 = vrot.slane %v195, %v199
    %vm202 = vcmask 261120
    %v204 = vsel %vm202, %v189, 0
    %v207 = vsel %vm202, %v190, 0
    %209 = vmatprep.subr.mxu0 0.0
    %210 = vmatpush1.msra.mxu0 0.0
    %211 = vmatprep.subr.mxu0 0.0
    %212 = vmatpush1.msra.mxu0 0.0
    %213 = vmatprep.subr.mxu0 0.0
    %214 = vmatpush1.msra.mxu0 0.0
    %215 = vmatprep.subr.mxu0 0.0
    %216 = vmatpush1.msra.mxu0 0.0
    %217 = vmatprep.subr.mxu0 0.0
    %218 = vmatpush1.msra.mxu0 0.0
    %219 = vmatprep.subr.mxu0 0.0
    %220 = vmatpush1.msra.mxu0 0.0
    %221 = vmatprep.subr.mxu0 0.0
    %222 = vmatpush1.msra.mxu0 0.0
    %223 = vmatprep.subr.mxu0 0.0
    %224 = vmatpush1.msra.mxu0 0.0
    %225 = vmatprep.subr.mxu0 0.0
    %226 = vmatpush1.msra.mxu0 0.0
    %227 = vmatprep.subr.mxu0 0.0
    %228 = vmatpush1.msra.mxu0 0.0
    %229 = vmatprep.subr.mxu0 0.0
    %230 = vmatpush1.msra.mxu0 0.0
    %231 = vmatprep.subr.mxu0 0.0
    %232 = vmatpush1.msra.mxu0 0.0
    %233 = vmatprep.subr.mxu0 0.0
    %234 = vmatpush1.msra.mxu0 %v194
    %235 = vmatprep.subr.mxu0 0.0
    %236 = vmatpush1.msra.mxu0 %v193
    %237 = vmatprep.subr.mxu0 0.0
    %238 = vmatpush1.msra.mxu0 %v192
    %239 = vmatprep.subr.mxu0 0.0
    %240 = vmatpush1.msra.mxu0 %v191
    %241 = vmatprep.subr.mxu0 0.0
    %242 = vmatpush2.msra.mxu0 0.0
    %243 = vmatprep.subr.mxu0 0.0
    %244 = vmatpush2.msra.mxu0 0.0
    %245 = vmatprep.subr.mxu0 0.0
    %246 = vmatpush2.msra.mxu0 0.0
    %247 = vmatprep.subr.mxu0 0.0
    %248 = vmatpush2.msra.mxu0 0.0
    %249 = vmatprep.subr.mxu0 0.0
    %250 = vmatpush2.msra.mxu0 0.0
    %251 = vmatprep.subr.mxu0 0.0
    %252 = vmatpush2.msra.mxu0 0.0
    %253 = vmatprep.subr.mxu0 0.0
    %254 = vmatpush2.msra.mxu0 0.0
    %255 = vmatprep.subr.mxu0 0.0
    %256 = vmatpush2.msra.mxu0 0.0
    %257 = vmatprep.subr.mxu0 0.0
    %258 = vmatpush2.msra.mxu0 0.0
    %259 = vmatprep.subr.mxu0 0.0
    %260 = vmatpush2.msra.mxu0 0.0
    %261 = vmatprep.subr.mxu0 0.0
    %262 = vmatpush2.msra.mxu0 0.0
    %263 = vmatprep.subr.mxu0 0.0
    %264 = vmatpush2.msra.mxu0 0.0
    %265 = vmatprep.subr.mxu0 0.0
    %266 = vmatpush2.msra.mxu0 0.0
    %267 = vmatprep.subr.mxu0 0.0
    %268 = vmatpush2.msra.mxu0 0.0
    %269 = vmatprep.subr.mxu0 0.0
    %270 = vmatpush2.msra.mxu0 0.0
    %271 = vmatprep.subr.mxu0 0.0
    %272 = vmatpush2.msra.mxu0 0.0
    %273 = vmatprep.mubr.f32.mxu0 0.0
    %274 = vmatmul.mubr.f32.gmra.mxu0 %v204
    %v275 = vpop.f32.mrf.mxu0
    %v276 = vadd.f32 %v200, %v275
    %v277 = vpop.f32.mrf.mxu0
    %278 = vmatprep.mubr.f32.mxu0 0.0
    %279 = vmatmul.mubr.f32.gmra.mxu0 %v207
    %v280 = vpop.f32.mrf.mxu0
    %v281 = vadd.f32 %v200, %v280
    %v282 = vpop.f32.mrf.mxu0
    %283 = vdwg.mxu0
    %v284 = vld [vmem:[#allocation2] sm:$0xff]
    %v285 = vld [vmem:[#allocation2 + $0x8] sm:$0xff]
    %v287 = vsel %vm202, %v284, 0
    %v290 = vsel %vm202, %v276, 0
    %292 = vmatprep.subr.mxu0 0.0
    %293 = vmatpush1.xpose.msra.mxu0 0.0
    %294 = vmatprep.subr.mxu0 0.0
    %295 = vmatpush1.xpose.msra.mxu0 0.0
    %296 = vmatprep.subr.mxu0 0.0
    %297 = vmatpush1.xpose.msra.mxu0 0.0
    %298 = vmatprep.subr.mxu0 0.0
    %299 = vmatpush1.xpose.msra.mxu0 0.0
    %300 = vmatprep.subr.mxu0 0.0
    %301 = vmatpush1.xpose.msra.mxu0 0.0
    %302 = vmatprep.subr.mxu0 0.0
    %303 = vmatpush1.xpose.msra.mxu0 0.0
    %304 = vmatprep.subr.mxu0 0.0
    %305 = vmatpush1.xpose.msra.mxu0 0.0
    %306 = vmatprep.subr.mxu0 0.0
    %307 = vmatpush1.xpose.msra.mxu0 0.0
    %308 = vmatprep.subr.mxu0 0.0
    %309 = vmatpush1.xpose.msra.mxu0 0.0
    %310 = vmatprep.subr.mxu0 0.0
    %311 = vmatpush1.xpose.msra.mxu0 0.0
    %312 = vmatprep.subr.mxu0 0.0
    %313 = vmatpush1.xpose.msra.mxu0 0.0
    %314 = vmatprep.subr.mxu0 0.0
    %315 = vmatpush1.xpose.msra.mxu0 0.0
    %316 = vmatprep.subr.mxu0 0.0
    %317 = vmatpush1.xpose.msra.mxu0 0.0
    %318 = vmatprep.subr.mxu0 0.0
    %319 = vmatpush1.xpose.msra.mxu0 0.0
    %320 = vmatprep.subr.mxu0 0.0
    %321 = vmatpush1.xpose.msra.mxu0 0.0
    %322 = vmatprep.subr.mxu0 0.0
    %323 = vmatpush1.xpose.msra.mxu0 %v290
    %324 = vmatprep.subr.mxu0 0.0
    %325 = vmatpush2.xpose.msra.mxu0 0.0
    %326 = vmatprep.subr.mxu0 0.0
    %327 = vmatpush2.xpose.msra.mxu0 0.0
    %328 = vmatprep.subr.mxu0 0.0
    %329 = vmatpush2.xpose.msra.mxu0 0.0
    %330 = vmatprep.subr.mxu0 0.0
    %331 = vmatpush2.xpose.msra.mxu0 0.0
    %332 = vmatprep.subr.mxu0 0.0
    %333 = vmatpush2.xpose.msra.mxu0 0.0
    %334 = vmatprep.subr.mxu0 0.0
    %335 = vmatpush2.xpose.msra.mxu0 0.0
    %336 = vmatprep.subr.mxu0 0.0
    %337 = vmatpush2.xpose.msra.mxu0 0.0
    %338 = vmatprep.subr.mxu0 0.0
    %339 = vmatpush2.xpose.msra.mxu0 0.0
    %340 = vmatprep.subr.mxu0 0.0
    %341 = vmatpush2.xpose.msra.mxu0 0.0
    %342 = vmatprep.subr.mxu0 0.0
    %343 = vmatpush2.xpose.msra.mxu0 0.0
    %344 = vmatprep.subr.mxu0 0.0
    %345 = vmatpush2.xpose.msra.mxu0 0.0
    %346 = vmatprep.subr.mxu0 0.0
    %347 = vmatpush2.xpose.msra.mxu0 0.0
    %348 = vmatprep.subr.mxu0 0.0
    %349 = vmatpush2.xpose.msra.mxu0 0.0
    %350 = vmatprep.subr.mxu0 0.0
    %351 = vmatpush2.xpose.msra.mxu0 0.0
    %352 = vmatprep.subr.mxu0 0.0
    %353 = vmatpush2.xpose.msra.mxu0 0.0
    %354 = vmatprep.subr.mxu0 0.0
    %355 = vmatpush2.xpose.msra.mxu0 0.0
    %356 = vmatprep.mubr.f32.mxu0 0.0
    %357 = vmatmul.mubr.f32.gmra.mxu0 %v287
    %v358 = vpop.f32.mrf.mxu0
    %v359 = vadd.f32 0.0, %v358
    %v360 = vpop.f32.mrf.mxu0
    %361 = vdwg.mxu0
    %v363 = vsel %vm202, %v285, 0
    %v366 = vsel %vm202, %v281, 0
    %368 = vmatprep.subr.mxu0 0.0
    %369 = vmatpush1.xpose.msra.mxu0 0.0
    %370 = vmatprep.subr.mxu0 0.0
    %371 = vmatpush1.xpose.msra.mxu0 0.0
    %372 = vmatprep.subr.mxu0 0.0
    %373 = vmatpush1.xpose.msra.mxu0 0.0
    %374 = vmatprep.subr.mxu0 0.0
    %375 = vmatpush1.xpose.msra.mxu0 0.0
    %376 = vmatprep.subr.mxu0 0.0
    %377 = vmatpush1.xpose.msra.mxu0 0.0
    %378 = vmatprep.subr.mxu0 0.0
    %379 = vmatpush1.xpose.msra.mxu0 0.0
    %380 = vmatprep.subr.mxu0 0.0
    %381 = vmatpush1.xpose.msra.mxu0 0.0
    %382 = vmatprep.subr.mxu0 0.0
    %383 = vmatpush1.xpose.msra.mxu0 0.0
    %384 = vmatprep.subr.mxu0 0.0
    %385 = vmatpush1.xpose.msra.mxu0 0.0
    %386 = vmatprep.subr.mxu0 0.0
    %387 = vmatpush1.xpose.msra.mxu0 0.0
    %388 = vmatprep.subr.mxu0 0.0
    %389 = vmatpush1.xpose.msra.mxu0 0.0
    %390 = vmatprep.subr.mxu0 0.0
    %391 = vmatpush1.xpose.msra.mxu0 0.0
    %392 = vmatprep.subr.mxu0 0.0
    %393 = vmatpush1.xpose.msra.mxu0 0.0
    %394 = vmatprep.subr.mxu0 0.0
    %395 = vmatpush1.xpose.msra.mxu0 0.0
    %396 = vmatprep.subr.mxu0 0.0
    %397 = vmatpush1.xpose.msra.mxu0 0.0
    %398 = vmatprep.subr.mxu0 0.0
    %399 = vmatpush1.xpose.msra.mxu0 %v366
    %400 = vmatprep.subr.mxu0 0.0
    %401 = vmatpush2.xpose.msra.mxu0 0.0
    %402 = vmatprep.subr.mxu0 0.0
    %403 = vmatpush2.xpose.msra.mxu0 0.0
    %404 = vmatprep.subr.mxu0 0.0
    %405 = vmatpush2.xpose.msra.mxu0 0.0
    %406 = vmatprep.subr.mxu0 0.0
    %407 = vmatpush2.xpose.msra.mxu0 0.0
    %408 = vmatprep.subr.mxu0 0.0
    %409 = vmatpush2.xpose.msra.mxu0 0.0
    %410 = vmatprep.subr.mxu0 0.0
    %411 = vmatpush2.xpose.msra.mxu0 0.0
    %412 = vmatprep.subr.mxu0 0.0
    %413 = vmatpush2.xpose.msra.mxu0 0.0
    %414 = vmatprep.subr.mxu0 0.0
    %415 = vmatpush2.xpose.msra.mxu0 0.0
    %416 = vmatprep.subr.mxu0 0.0
    %417 = vmatpush2.xpose.msra.mxu0 0.0
    %418 = vmatprep.subr.mxu0 0.0
    %419 = vmatpush2.xpose.msra.mxu0 0.0
    %420 = vmatprep.subr.mxu0 0.0
    %421 = vmatpush2.xpose.msra.mxu0 0.0
    %422 = vmatprep.subr.mxu0 0.0
    %423 = vmatpush2.xpose.msra.mxu0 0.0
    %424 = vmatprep.subr.mxu0 0.0
    %425 = vmatpush2.xpose.msra.mxu0 0.0
    %426 = vmatprep.subr.mxu0 0.0
    %427 = vmatpush2.xpose.msra.mxu0 0.0
    %428 = vmatprep.subr.mxu0 0.0
    %429 = vmatpush2.xpose.msra.mxu0 0.0
    %430 = vmatprep.subr.mxu0 0.0
    %431 = vmatpush2.xpose.msra.mxu0 0.0
    %432 = vmatprep.mubr.f32.mxu0 0.0
    %433 = vmatmul.mubr.f32.gmra.mxu0 %v363
    %v434 = vpop.f32.mrf.mxu0
    %v435 = vadd.f32 0.0, %v434
    %v436 = vpop.f32.mrf.mxu0
    %437 = vdwg.mxu0
    %v438 = vld [vmem:[#allocation3] sm:$0xff]
    %v439 = vld [vmem:[#allocation3 + $0x8] sm:$0xff]
    %vm440 = vcmask 64512
    %v441 = vsel %vm440, %v359, -inf
    %442 = vmax.xlane.f32.xlu0 %v441
    %v443 = vpop.xlane.xlu0 %442
    %v444 = vsel %vm440, %v435, -inf
    %445 = vmax.xlane.f32.xlu0 %v444
    %v446 = vpop.xlane.xlu0 %445
    %v447 = vmax.f32 %v438, %v443
    %v448 = vmax.f32 %v439, %v446
    %v449 = vsub.f32 %v438, %v447
    %v450 = vsub.f32 %v439, %v448
    %v451 = vmul.f32 %v449, 1.442695
    %v452 = vpow.pop %v451
    %v453 = vmul.f32 %v450, 1.442695
    %v454 = vpow.pop %v453
    %456 = vset.pattern.permute.xlu0 0
    %457 = vperm.xlu0 %456, %v447
    %v458 = vpop.permute.xlu0 %457
    %461 = vset.pattern.permute.xlu0 0
    %462 = vperm.xlu0 %461, %v448
    %v463 = vpop.permute.xlu0 %462
    %v465 = vsub.f32 %v359, %v458
    %v466 = vsub.f32 %v435, %v463
    %v467 = vmul.f32 %v465, 1.442695
    %v468 = vpow.pop %v467
    %v469 = vmul.f32 %v466, 1.442695
    %v470 = vpow.pop %v469
    %v471 = vld [vmem:[#allocation4] sm:$0xff]
    %v472 = vld [vmem:[#allocation4 + $0x8] sm:$0xff]
    %v473 = vmul.f32 %v452, %v471
    %v474 = vmul.f32 %v454, %v472
    %v475 = vsel %vm440, %v468, 0.0
    %476 = vadd.xlane.f32.xlu0 %v475
    %v477 = vpop.xlane.xlu0 %476
    %v478 = vsel %vm440, %v470, 0.0
    %479 = vadd.xlane.f32.xlu0 %v478
    %v480 = vpop.xlane.xlu0 %479
    %v481 = vadd.f32 %v473, %v477
    %v482 = vadd.f32 %v474, %v480
    %vm483 = vcmask 7168
    %484 = vst.msk [vmem:[#allocation4] sm:$0xff] %vm483, %v481
    %485 = vst.msk [vmem:[#allocation4 + $0x8] sm:$0xff] %vm483, %v482
    %v486 = vld [vmem:[#allocation5] sm:$0xff]
    %v487 = vld [vmem:[#allocation5 + $0x8] sm:$0xff]
    %489 = vset.pattern.permute.xlu0 0
    %490 = vperm.xlu0 %489, %v452
    %v491 = vpop.permute.xlu0 %490
    %494 = vset.pattern.permute.xlu0 0
    %495 = vperm.xlu0 %494, %v454
    %v496 = vpop.permute.xlu0 %495
    %v498 = vmul.f32 %v491, %v486
    %v499 = vmul.f32 %v496, %v487
    %500 = vrot.lane.b32.xlu0 %v276, 96
    %v501 = vpop.permute.xlu0 %500
    %v504 = vsel %vm440, %v468, 0
    %506 = vmatprep.subr.mxu0 0.0
    %507 = vmatpush1.msra.mxu0 0.0
    %508 = vmatprep.subr.mxu0 0.0
    %509 = vmatpush1.msra.mxu0 0.0
    %510 = vmatprep.subr.mxu0 0.0
    %511 = vmatpush1.msra.mxu0 0.0
    %512 = vmatprep.subr.mxu0 0.0
    %513 = vmatpush1.msra.mxu0 0.0
    %514 = vmatprep.subr.mxu0 0.0
    %515 = vmatpush1.msra.mxu0 0.0
    %516 = vmatprep.subr.mxu0 0.0
    %517 = vmatpush1.msra.mxu0 0.0
    %518 = vmatprep.subr.mxu0 0.0
    %519 = vmatpush1.msra.mxu0 0.0
    %520 = vmatprep.subr.mxu0 0.0
    %521 = vmatpush1.msra.mxu0 0.0
    %522 = vmatprep.subr.mxu0 0.0
    %523 = vmatpush1.msra.mxu0 0.0
    %524 = vmatprep.subr.mxu0 0.0
    %525 = vmatpush1.msra.mxu0 0.0
    %526 = vmatprep.subr.mxu0 0.0
    %527 = vmatpush1.msra.mxu0 0.0
    %528 = vmatprep.subr.mxu0 0.0
    %529 = vmatpush1.msra.mxu0 0.0
    %530 = vmatprep.subr.mxu0 0.0
    %531 = vmatpush1.msra.mxu0 0.0
    %532 = vmatprep.subr.mxu0 0.0
    %533 = vmatpush1.msra.mxu0 0.0
    %534 = vmatprep.subr.mxu0 0.0
    %535 = vmatpush1.msra.mxu0 0.0
    %536 = vmatprep.subr.mxu0 0.0
    %537 = vmatpush1.msra.mxu0 %v501
    %538 = vmatprep.subr.mxu0 0.0
    %539 = vmatpush2.msra.mxu0 0.0
    %540 = vmatprep.subr.mxu0 0.0
    %541 = vmatpush2.msra.mxu0 0.0
    %542 = vmatprep.subr.mxu0 0.0
    %543 = vmatpush2.msra.mxu0 0.0
    %544 = vmatprep.subr.mxu0 0.0
    %545 = vmatpush2.msra.mxu0 0.0
    %546 = vmatprep.subr.mxu0 0.0
    %547 = vmatpush2.msra.mxu0 0.0
    %548 = vmatprep.subr.mxu0 0.0
    %549 = vmatpush2.msra.mxu0 0.0
    %550 = vmatprep.subr.mxu0 0.0
    %551 = vmatpush2.msra.mxu0 0.0
    %552 = vmatprep.subr.mxu0 0.0
    %553 = vmatpush2.msra.mxu0 0.0
    %554 = vmatprep.subr.mxu0 0.0
    %555 = vmatpush2.msra.mxu0 0.0
    %556 = vmatprep.subr.mxu0 0.0
    %557 = vmatpush2.msra.mxu0 0.0
    %558 = vmatprep.subr.mxu0 0.0
    %559 = vmatpush2.msra.mxu0 0.0
    %560 = vmatprep.subr.mxu0 0.0
    %561 = vmatpush2.msra.mxu0 0.0
    %562 = vmatprep.subr.mxu0 0.0
    %563 = vmatpush2.msra.mxu0 0.0
    %564 = vmatprep.subr.mxu0 0.0
    %565 = vmatpush2.msra.mxu0 0.0
    %566 = vmatprep.subr.mxu0 0.0
    %567 = vmatpush2.msra.mxu0 0.0
    %568 = vmatprep.subr.mxu0 0.0
    %569 = vmatpush2.msra.mxu0 0.0
    %570 = vmatprep.mubr.f32.mxu0 0.0
    %571 = vmatmul.mubr.f32.gmra.mxu0 %v504
    %v572 = vpop.f32.mrf.mxu0
    %v573 = vadd.f32 0.0, %v572
    %v574 = vpop.f32.mrf.mxu0
    %575 = vdwg.mxu0
    %576 = vrot.lane.b32.xlu0 %v281, 96
    %v577 = vpop.permute.xlu0 %576
    %v580 = vsel %vm440, %v470, 0
    %582 = vmatprep.subr.mxu0 0.0
    %583 = vmatpush1.msra.mxu0 0.0
    %584 = vmatprep.subr.mxu0 0.0
    %585 = vmatpush1.msra.mxu0 0.0
    %586 = vmatprep.subr.mxu0 0.0
    %587 = vmatpush1.msra.mxu0 0.0
    %588 = vmatprep.subr.mxu0 0.0
    %589 = vmatpush1.msra.mxu0 0.0
    %590 = vmatprep.subr.mxu0 0.0
    %591 = vmatpush1.msra.mxu0 0.0
    %592 = vmatprep.subr.mxu0 0.0
    %593 = vmatpush1.msra.mxu0 0.0
    %594 = vmatprep.subr.mxu0 0.0
    %595 = vmatpush1.msra.mxu0 0.0
    %596 = vmatprep.subr.mxu0 0.0
    %597 = vmatpush1.msra.mxu0 0.0
    %598 = vmatprep.subr.mxu0 0.0
    %599 = vmatpush1.msra.mxu0 0.0
    %600 = vmatprep.subr.mxu0 0.0
    %601 = vmatpush1.msra.mxu0 0.0
    %602 = vmatprep.subr.mxu0 0.0
    %603 = vmatpush1.msra.mxu0 0.0
    %604 = vmatprep.subr.mxu0 0.0
    %605 = vmatpush1.msra.mxu0 0.0
    %606 = vmatprep.subr.mxu0 0.0
    %607 = vmatpush1.msra.mxu0 0.0
    %608 = vmatprep.subr.mxu0 0.0
    %609 = vmatpush1.msra.mxu0 0.0
    %610 = vmatprep.subr.mxu0 0.0
    %611 = vmatpush1.msra.mxu0 0.0
    %612 = vmatprep.subr.mxu0 0.0
    %613 = vmatpush1.msra.mxu0 %v577
    %614 = vmatprep.subr.mxu0 0.0
    %615 = vmatpush2.msra.mxu0 0.0
    %616 = vmatprep.subr.mxu0 0.0
    %617 = vmatpush2.msra.mxu0 0.0
    %618 = vmatprep.subr.mxu0 0.0
    %619 = vmatpush2.msra.mxu0 0.0
    %620 = vmatprep.subr.mxu0 0.0
    %621 = vmatpush2.msra.mxu0 0.0
    %622 = vmatprep.subr.mxu0 0.0
    %623 = vmatpush2.msra.mxu0 0.0
    %624 = vmatprep.subr.mxu0 0.0
    %625 = vmatpush2.msra.mxu0 0.0
    %626 = vmatprep.subr.mxu0 0.0
    %627 = vmatpush2.msra.mxu0 0.0
    %628 = vmatprep.subr.mxu0 0.0
    %629 = vmatpush2.msra.mxu0 0.0
    %630 = vmatprep.subr.mxu0 0.0
    %631 = vmatpush2.msra.mxu0 0.0
    %632 = vmatprep.subr.mxu0 0.0
    %633 = vmatpush2.msra.mxu0 0.0
    %634 = vmatprep.subr.mxu0 0.0
    %635 = vmatpush2.msra.mxu0 0.0
    %636 = vmatprep.subr.mxu0 0.0
    %637 = vmatpush2.msra.mxu0 0.0
    %638 = vmatprep.subr.mxu0 0.0
    %639 = vmatpush2.msra.mxu0 0.0
    %640 = vmatprep.subr.mxu0 0.0
    %641 = vmatpush2.msra.mxu0 0.0
    %642 = vmatprep.subr.mxu0 0.0
    %643 = vmatpush2.msra.mxu0 0.0
    %644 = vmatprep.subr.mxu0 0.0
    %645 = vmatpush2.msra.mxu0 0.0
    %646 = vmatprep.mubr.f32.mxu0 0.0
    %647 = vmatmul.mubr.f32.gmra.mxu0 %v580
    %v648 = vpop.f32.mrf.mxu0
    %v649 = vadd.f32 0.0, %v648
    %v650 = vpop.f32.mrf.mxu0
    %651 = vdwg.mxu0
    %v652 = vadd.f32 %v498, %v573
    %v653 = vadd.f32 %v499, %v649
    %654 = vst.msk [vmem:[#allocation5] sm:$0xff] %vm202, %v652
    %655 = vst.msk [vmem:[#allocation5 + $0x8] sm:$0xff] %vm202, %v653
    %656 = vst.msk [vmem:[#allocation3] sm:$0xff] %vm483, %v447
    %657 = vst.msk [vmem:[#allocation3 + $0x8] sm:$0xff] %vm483, %v448
    // Predicated region
    $region46: #{tpu_custom_call.1} parent=1 // pred_check
      %p658 = pneg %p79
    $region47: #{tpu_custom_call.1} parent=1 // pred_check_branch
      %660 = sbr.rel (%p658) target = $region49
    $region48: #{tpu_custom_call.1} parent=1 // pred_region
      %v661 = vld [vmem:[#allocation4] sm:$0xff]
      %v662 = vld [vmem:[#allocation4 + $0x8] sm:$0xff]
      %v663 = vrcp.pop %v661
      %v664 = vrcp.pop %v662
      %v665 = vld [vmem:[#allocation5] sm:$0xff]
      %v666 = vld [vmem:[#allocation5 + $0x8] sm:$0xff]
      %668 = vset.pattern.permute.xlu0 0
      %669 = vperm.xlu0 %668, %v663
      %v670 = vpop.permute.xlu0 %669
      %673 = vset.pattern.permute.xlu0 0
      %674 = vperm.xlu0 %673, %v664
      %v675 = vpop.permute.xlu0 %674
      %v677 = vmul.f32 %v665, %v670
      %v678 = vmul.f32 %v666, %v675
      %679 = vst.msk [vmem:[#allocation14] sm:$0xff] %vm202, %v677
      %680 = vst.msk [vmem:[#allocation14 + $0x8] sm:$0xff] %vm202, %v678
    $region49: #{tpu_custom_call.1} parent=1 // pred_fallthru
      _
    // Predicated region
    $region50: #{tpu_custom_call.1} parent=1 // pred_check
      _
    $region51: #{tpu_custom_call.1} parent=1 // pred_check_branch
      %682 = sbr.rel (0) target = $region53
    $region52: #{tpu_custom_call.1} parent=1 // pred_region
      %s684 = ssub.s32 256, 256
      %685 = vsyncadd [#allocation8], %s684
      %s686 = sshll.u32 [#allocation14], 4
      %s687 = int_to_ptr.vmem [resolvable:$true] %s686
      %692 = dma.vmem_to_hbm [thread:$0]  %s687, 256, %s6, [#allocation8], 128, 128, 8
    $region53: #{tpu_custom_call.1} parent=1 // pred_fallthru
      _
    // Predicated region
    $region54: #{tpu_custom_call.1} parent=1 // pred_check
      _
    $region55: #{tpu_custom_call.1} parent=1 // pred_check_branch
      %694 = sbr.rel (0) target = $region57
    $region56: #{tpu_custom_call.1} parent=1 // pred_region
      %695 = dma.done [#allocation8], 256
    $region57: #{tpu_custom_call.1} parent=1 // pred_fallthru
      _
    %696 = vsyncpa [#allocation7], 1
    %697 = vsyncpa [#allocation10], 1
    %698 = vsyncpa [#allocation13], 1
    %699 = vsyncpa [#allocation8], 1

</llo_original>
